<compile_context>
chip_gen: v7x
topology: tpu7x:2x2x1
jax: 0.10.0
libtpu: 0.0.40
codegen_flags: <defaults>
</compile_context>

<pallas_src>
import numpy as np
import jax
import jax.numpy as jnp
from jax.experimental import pallas as pl
from jax.experimental.pallas import tpu as pltpu

SELU_ALPHA = 1.6732632423543772
SELU_SCALE = 1.0507009873554805
BN_EPS = 1e-5


def _sinc_bandpass_filters(out_channels, kernel_size, sample_rate=16000):
    """Mel-spaced sinc band-pass filter bank, matches CONV.__init__ (mask=False)."""
    if kernel_size % 2 == 0:
        kernel_size += 1
    NFFT = 512
    f = int(sample_rate / 2) * np.linspace(0, 1, int(NFFT / 2) + 1)
    fmel = 2595 * np.log10(1 + f / 700)
    fmel_pts = np.linspace(fmel.min(), fmel.max(), out_channels + 1)
    mel = 700 * (10 ** (fmel_pts / 2595) - 1)
    hsupp = np.arange(-(kernel_size - 1) / 2, (kernel_size - 1) / 2 + 1)
    ham = np.hamming(kernel_size)
    band = np.zeros((out_channels, kernel_size), dtype=np.float64)
    for i in range(out_channels):
        fmin, fmax = mel[i], mel[i + 1]
        h_high = 2 * fmax / sample_rate * np.sinc(2 * fmax * hsupp / sample_rate)
        h_low = 2 * fmin / sample_rate * np.sinc(2 * fmin * hsupp / sample_rate)
        band[i, :] = ham * (h_high - h_low)
    return jnp.asarray(band, dtype=jnp.float32)


def raw2feat_kernel(x3_ref, w_ref, bn_ref, o_ref, q_ref):
    # x3_ref : (1, 3, T3)        phase-split input, x3[r, t] = x[3*t + r]
    # w_ref  : (9*C_pool, K+2)   banded, phase-stacked conv weights
    # bn_ref : (2,) SMEM         folded BatchNorm scale / shift
    # o_ref  : (1, 1, C_pool, L_pool)
    # q_ref  : (K+2, L_pool)     VMEM scratch, Q[s, ti] = x[3*ti + s]
    K2 = q_ref.shape[0]
    C_pool = o_ref.shape[2]
    L_pool = o_ref.shape[3]
    n_groups = w_ref.shape[0] // C_pool          # 9 = 3 (dt) * 3 (dc)

    # Build the Hankel RHS in VMEM from contiguous lane slices (no host im2col).
    for s in range(K2):
        q, r = divmod(s, 3)
        q_ref[pl.ds(s, 1), :] = x3_ref[0, pl.ds(r, 1), pl.ds(q, L_pool)]

    # Single stacked MXU matmul covers all 9 (dt, dc) pooling phases.
    s_mat = jnp.dot(w_ref[...], q_ref[...], preferred_element_type=jnp.float32)
    a = jnp.abs(s_mat)                            # (9*C_pool, L_pool)

    # 3x3 max-pool == max over the 9 sublane-aligned row groups (cheap VPU maxima).
    pooled = a[0:C_pool, :]
    for g in range(1, n_groups):
        pooled = jnp.maximum(pooled, a[g * C_pool:(g + 1) * C_pool, :])

    # BatchNorm2d(1), eval mode, folded into scale/shift scalars.
    # TODO(synk): training-mode batch statistics (cross-batch reduction) not implemented.
    y = pooled * bn_ref[0] + bn_ref[1]

    # SELU (exp only on the clamped-negative branch to avoid overflow).
    neg = SELU_ALPHA * (jnp.exp(jnp.minimum(y, 0.0)) - 1.0)
    y = SELU_SCALE * jnp.where(y > 0.0, y, neg)

    o_ref[0, 0, :, :] = y.astype(o_ref.dtype)


def raw2feat(x, W, gamma, beta, run_mean, run_var, eps=BN_EPS):
    """x: (bs, samples) f32, W: (C_out, K) conv_time filters (in_channels=1)."""
    # TODO(synk): Freq_aug / mask=True random filter-zeroing branch of CONV is not implemented.
    bs, S = x.shape
    C_out, K = W.shape
    L_out = S - K + 1
    assert L_out % 3 == 0 and C_out % 3 == 0, "pick shapes divisible by 3 for the 3x3 pool"
    L_pool = L_out // 3
    C_pool = C_out // 3
    K2 = K + 2

    # --- Host-side glue (pure relayout, no K-fold inflation) -----------------
    # Phase-split the raw waveform: x3[b, r, t] = x[b, 3*t + r].
    S_pad = 3 * ((S + 2) // 3)
    if S_pad != S:
        x = jnp.pad(x, ((0, 0), (0, S_pad - S)))
    T3 = S_pad // 3
    x3 = x.reshape(bs, T3, 3).transpose(0, 2, 1).astype(jnp.float32)      # (bs, 3, T3)

    # Stack the 3x3 pooling phases into a single banded weight matrix:
    #   wbig[(dt*3 + dc)*C_pool + ci, s] = W[3*ci + dc, s - dt]   (zero outside the band)
    w_phase = jnp.transpose(W.reshape(C_pool, 3, K), (1, 0, 2))           # (dc, ci, k)
    w_flat = w_phase.reshape(3 * C_pool, K)
    wbig = jnp.zeros((3, 3 * C_pool, K2), jnp.float32)
    for dt in range(3):
        wbig = wbig.at[dt, :, dt:dt + K].set(w_flat)
    wbig = wbig.reshape(9 * C_pool, K2)                                   # (9*C_pool, K+2)

    # Fold BatchNorm (eval) into scale/shift scalars.
    scale = gamma / jnp.sqrt(run_var + eps)
    shift = beta - run_mean * scale
    bn = jnp.concatenate([scale, shift]).astype(jnp.float32)              # (2,)

    return pl.pallas_call(
        raw2feat_kernel,
        out_shape=jax.ShapeDtypeStruct((bs, 1, C_pool, L_pool), jnp.float32),
        grid_spec=pltpu.PrefetchScalarGridSpec(
            num_scalar_prefetch=0,
            grid=(bs,),
            in_specs=[
                pl.BlockSpec((1, 3, T3), lambda b: (b, 0, 0)),
                pl.BlockSpec((9 * C_pool, K2), lambda b: (0, 0)),
                pl.BlockSpec(memory_space=pltpu.MemorySpace.SMEM),
            ],
            out_specs=pl.BlockSpec((1, 1, C_pool, L_pool), lambda b: (b, 0, 0, 0)),
            scratch_shapes=[pltpu.VMEM((K2, L_pool), jnp.float32)],
        ),
        compiler_params=pltpu.CompilerParams(dimension_semantics=("parallel",)),
    )(x3, wbig, bn)


def raw2feat_reference(x, W, gamma, beta, run_mean, run_var, eps=BN_EPS):
    """Pure-JAX reference mirroring the PyTorch forward."""
    bs, S = x.shape
    C_out, K = W.shape
    conv = jax.lax.conv_general_dilated(
        x[:, None, :], W[:, None, :], window_strides=(1,), padding="VALID",
        dimension_numbers=("NCH", "OIH", "NCH"))          # (bs, C_out, L_out)
    y = jnp.abs(conv)[:, None]                            # (bs, 1, C_out, L_out)
    L_out = y.shape[-1]
    y = y.reshape(bs, 1, C_out // 3, 3, L_out // 3, 3).max(axis=(3, 5))
    y = (y - run_mean) / jnp.sqrt(run_var + eps) * gamma + beta
    return jax.nn.selu(y)


if __name__ == "__main__":
    key = jax.random.PRNGKey(0)

    bs, samples = 2, 414          # L_out = 414 - 31 + 1 = 384 -> pooled length 128 (lane-dense)
    C_out, K = 24, 31             # pooled channels = 8 (one sublane tile)

    x = jax.random.normal(key, (bs, samples), dtype=jnp.float32)
    W = _sinc_bandpass_filters(C_out, K)                  # CONV band_pass filters (mask=False)
    gamma = jnp.array([0.9], jnp.float32)                 # first_bn weight
    beta = jnp.array([0.1], jnp.float32)                  # first_bn bias
    run_mean = jnp.array([0.05], jnp.float32)
    run_var = jnp.array([1.2], jnp.float32)

    out = raw2feat(x, W, gamma, beta, run_mean, run_var)
    out = jax.block_until_ready(out)

    ref = raw2feat_reference(x, W, gamma, beta, run_mean, run_var)
    assert out.shape == (bs, 1, C_out // 3, (samples - K + 1) // 3), out.shape
    assert jnp.allclose(out, ref, atol=1e-4, rtol=1e-4), float(jnp.max(jnp.abs(out - ref)))
    print("KERNEL_OK")
</pallas_src>

<mosaic_0001>
module attributes {stable_mosaic.version = 11 : i64} {
  func.func @raw2feat_kernel(%arg0: i32, %arg1: memref<1x3x138xf32, #tpu.memory_space<vmem>>, %arg2: memref<72x33xf32, #tpu.memory_space<vmem>>, %arg3: memref<2xf32, #tpu.memory_space<smem>>, %arg4: memref<1x1x8x128xf32, #tpu.memory_space<vmem>>, %arg5: memref<33x128xf32, #tpu.memory_space<vmem>>) attributes {dimension_semantics = [#tpu.dimension_semantics<parallel>], iteration_bounds = array<i64: 2>, scalar_prefetch = 0 : i64, scratch_operands = 1 : i64, tpu.core_type = #tpu.core_type<tc>, window_params = [{transform_indices = @transform_0, window_bounds = array<i64: 1, 3, 138>}, {pipeline_mode = #tpu.pipeline_mode<synchronous>, transform_indices = @transform_1, window_bounds = array<i64: 72, 33>}, {transform_indices = @transform_2, window_bounds = array<i64: 2>}, {transform_indices = @transform_3, window_bounds = array<i64: 1, 1, 8, 128>}]} {
    %c0 = arith.constant 0 : index
    %c0_0 = arith.constant 0 : index
    %c0_1 = arith.constant 0 : index
    %0 = vector.load %arg1[%c0, %c0_0, %c0_1] : memref<1x3x138xf32, #tpu.memory_space<vmem>>, vector<1x1x128xf32>
    %1 = vector.shape_cast %0 : vector<1x1x128xf32> to vector<1x128xf32>
    %c0_2 = arith.constant 0 : index
    %c0_3 = arith.constant 0 : index
    %2 = vector.load %arg5[%c0_2, %c0_3] : memref<33x128xf32, #tpu.memory_space<vmem>>, vector<1x128xf32>
    tpu.vector_store %arg5[%c0_2, %c0_3], %1 {strides = array<i32>} : memref<33x128xf32, #tpu.memory_space<vmem>>, vector<1x128xf32>,
    %c0_4 = arith.constant 0 : index
    %c1 = arith.constant 1 : index
    %c0_5 = arith.constant 0 : index
    %3 = vector.load %arg1[%c0_4, %c1, %c0_5] : memref<1x3x138xf32, #tpu.memory_space<vmem>>, vector<1x1x128xf32>
    %4 = vector.shape_cast %3 : vector<1x1x128xf32> to vector<1x128xf32>
    %c1_6 = arith.constant 1 : index
    %c0_7 = arith.constant 0 : index
    %5 = vector.load %arg5[%c1_6, %c0_7] : memref<33x128xf32, #tpu.memory_space<vmem>>, vector<1x128xf32>
    tpu.vector_store %arg5[%c1_6, %c0_7], %4 {strides = array<i32>} : memref<33x128xf32, #tpu.memory_space<vmem>>, vector<1x128xf32>,
    %c0_8 = arith.constant 0 : index
    %c2 = arith.constant 2 : index
    %c0_9 = arith.constant 0 : index
    %6 = vector.load %arg1[%c0_8, %c2, %c0_9] : memref<1x3x138xf32, #tpu.memory_space<vmem>>, vector<1x1x128xf32>
    %7 = vector.shape_cast %6 : vector<1x1x128xf32> to vector<1x128xf32>
    %c2_10 = arith.constant 2 : index
    %c0_11 = arith.constant 0 : index
    %8 = vector.load %arg5[%c2_10, %c0_11] : memref<33x128xf32, #tpu.memory_space<vmem>>, vector<1x128xf32>
    tpu.vector_store %arg5[%c2_10, %c0_11], %7 {strides = array<i32>} : memref<33x128xf32, #tpu.memory_space<vmem>>, vector<1x128xf32>,
    %c0_12 = arith.constant 0 : index
    %c0_13 = arith.constant 0 : index
    %c1_14 = arith.constant 1 : index
    %9 = vector.load %arg1[%c0_12, %c0_13, %c1_14] : memref<1x3x138xf32, #tpu.memory_space<vmem>>, vector<1x1x128xf32>
    %10 = vector.shape_cast %9 : vector<1x1x128xf32> to vector<1x128xf32>
    %c3 = arith.constant 3 : index
    %c0_15 = arith.constant 0 : index
    %11 = vector.load %arg5[%c3, %c0_15] : memref<33x128xf32, #tpu.memory_space<vmem>>, vector<1x128xf32>
    tpu.vector_store %arg5[%c3, %c0_15], %10 {strides = array<i32>} : memref<33x128xf32, #tpu.memory_space<vmem>>, vector<1x128xf32>,
    %c0_16 = arith.constant 0 : index
    %c1_17 = arith.constant 1 : index
    %c1_18 = arith.constant 1 : index
    %12 = vector.load %arg1[%c0_16, %c1_17, %c1_18] : memref<1x3x138xf32, #tpu.memory_space<vmem>>, vector<1x1x128xf32>
    %13 = vector.shape_cast %12 : vector<1x1x128xf32> to vector<1x128xf32>
    %c4 = arith.constant 4 : index
    %c0_19 = arith.constant 0 : index
    %14 = vector.load %arg5[%c4, %c0_19] : memref<33x128xf32, #tpu.memory_space<vmem>>, vector<1x128xf32>
    tpu.vector_store %arg5[%c4, %c0_19], %13 {strides = array<i32>} : memref<33x128xf32, #tpu.memory_space<vmem>>, vector<1x128xf32>,
    %c0_20 = arith.constant 0 : index
    %c2_21 = arith.constant 2 : index
    %c1_22 = arith.constant 1 : index
    %15 = vector.load %arg1[%c0_20, %c2_21, %c1_22] : memref<1x3x138xf32, #tpu.memory_space<vmem>>, vector<1x1x128xf32>
    %16 = vector.shape_cast %15 : vector<1x1x128xf32> to vector<1x128xf32>
    %c5 = arith.constant 5 : index
    %c0_23 = arith.constant 0 : index
    %17 = vector.load %arg5[%c5, %c0_23] : memref<33x128xf32, #tpu.memory_space<vmem>>, vector<1x128xf32>
    tpu.vector_store %arg5[%c5, %c0_23], %16 {strides = array<i32>} : memref<33x128xf32, #tpu.memory_space<vmem>>, vector<1x128xf32>,
    %c0_24 = arith.constant 0 : index
    %c0_25 = arith.constant 0 : index
    %c2_26 = arith.constant 2 : index
    %18 = vector.load %arg1[%c0_24, %c0_25, %c2_26] : memref<1x3x138xf32, #tpu.memory_space<vmem>>, vector<1x1x128xf32>
    %19 = vector.shape_cast %18 : vector<1x1x128xf32> to vector<1x128xf32>
    %c6 = arith.constant 6 : index
    %c0_27 = arith.constant 0 : index
    %20 = vector.load %arg5[%c6, %c0_27] : memref<33x128xf32, #tpu.memory_space<vmem>>, vector<1x128xf32>
    tpu.vector_store %arg5[%c6, %c0_27], %19 {strides = array<i32>} : memref<33x128xf32, #tpu.memory_space<vmem>>, vector<1x128xf32>,
    %c0_28 = arith.constant 0 : index
    %c1_29 = arith.constant 1 : index
    %c2_30 = arith.constant 2 : index
    %21 = vector.load %arg1[%c0_28, %c1_29, %c2_30] : memref<1x3x138xf32, #tpu.memory_space<vmem>>, vector<1x1x128xf32>
    %22 = vector.shape_cast %21 : vector<1x1x128xf32> to vector<1x128xf32>
    %c7 = arith.constant 7 : index
    %c0_31 = arith.constant 0 : index
    %23 = vector.load %arg5[%c7, %c0_31] : memref<33x128xf32, #tpu.memory_space<vmem>>, vector<1x128xf32>
    tpu.vector_store %arg5[%c7, %c0_31], %22 {strides = array<i32>} : memref<33x128xf32, #tpu.memory_space<vmem>>, vector<1x128xf32>,
    %c0_32 = arith.constant 0 : index
    %c2_33 = arith.constant 2 : index
    %c2_34 = arith.constant 2 : index
    %24 = vector.load %arg1[%c0_32, %c2_33, %c2_34] : memref<1x3x138xf32, #tpu.memory_space<vmem>>, vector<1x1x128xf32>
    %25 = vector.shape_cast %24 : vector<1x1x128xf32> to vector<1x128xf32>
    %c8 = arith.constant 8 : index
    %c0_35 = arith.constant 0 : index
    %26 = vector.load %arg5[%c8, %c0_35] : memref<33x128xf32, #tpu.memory_space<vmem>>, vector<1x128xf32>
    tpu.vector_store %arg5[%c8, %c0_35], %25 {strides = array<i32>} : memref<33x128xf32, #tpu.memory_space<vmem>>, vector<1x128xf32>,
    %c0_36 = arith.constant 0 : index
    %c0_37 = arith.constant 0 : index
    %c3_38 = arith.constant 3 : index
    %27 = vector.load %arg1[%c0_36, %c0_37, %c3_38] : memref<1x3x138xf32, #tpu.memory_space<vmem>>, vector<1x1x128xf32>
    %28 = vector.shape_cast %27 : vector<1x1x128xf32> to vector<1x128xf32>
    %c9 = arith.constant 9 : index
    %c0_39 = arith.constant 0 : index
    %29 = vector.load %arg5[%c9, %c0_39] : memref<33x128xf32, #tpu.memory_space<vmem>>, vector<1x128xf32>
    tpu.vector_store %arg5[%c9, %c0_39], %28 {strides = array<i32>} : memref<33x128xf32, #tpu.memory_space<vmem>>, vector<1x128xf32>,
    %c0_40 = arith.constant 0 : index
    %c1_41 = arith.constant 1 : index
    %c3_42 = arith.constant 3 : index
    %30 = vector.load %arg1[%c0_40, %c1_41, %c3_42] : memref<1x3x138xf32, #tpu.memory_space<vmem>>, vector<1x1x128xf32>
    %31 = vector.shape_cast %30 : vector<1x1x128xf32> to vector<1x128xf32>
    %c10 = arith.constant 10 : index
    %c0_43 = arith.constant 0 : index
    %32 = vector.load %arg5[%c10, %c0_43] : memref<33x128xf32, #tpu.memory_space<vmem>>, vector<1x128xf32>
    tpu.vector_store %arg5[%c10, %c0_43], %31 {strides = array<i32>} : memref<33x128xf32, #tpu.memory_space<vmem>>, vector<1x128xf32>,
    %c0_44 = arith.constant 0 : index
    %c2_45 = arith.constant 2 : index
    %c3_46 = arith.constant 3 : index
    %33 = vector.load %arg1[%c0_44, %c2_45, %c3_46] : memref<1x3x138xf32, #tpu.memory_space<vmem>>, vector<1x1x128xf32>
    %34 = vector.shape_cast %33 : vector<1x1x128xf32> to vector<1x128xf32>
    %c11 = arith.constant 11 : index
    %c0_47 = arith.constant 0 : index
    %35 = vector.load %arg5[%c11, %c0_47] : memref<33x128xf32, #tpu.memory_space<vmem>>, vector<1x128xf32>
    tpu.vector_store %arg5[%c11, %c0_47], %34 {strides = array<i32>} : memref<33x128xf32, #tpu.memory_space<vmem>>, vector<1x128xf32>,
    %c0_48 = arith.constant 0 : index
    %c0_49 = arith.constant 0 : index
    %c4_50 = arith.constant 4 : index
    %36 = vector.load %arg1[%c0_48, %c0_49, %c4_50] : memref<1x3x138xf32, #tpu.memory_space<vmem>>, vector<1x1x128xf32>
    %37 = vector.shape_cast %36 : vector<1x1x128xf32> to vector<1x128xf32>
    %c12 = arith.constant 12 : index
    %c0_51 = arith.constant 0 : index
    %38 = vector.load %arg5[%c12, %c0_51] : memref<33x128xf32, #tpu.memory_space<vmem>>, vector<1x128xf32>
    tpu.vector_store %arg5[%c12, %c0_51], %37 {strides = array<i32>} : memref<33x128xf32, #tpu.memory_space<vmem>>, vector<1x128xf32>,
    %c0_52 = arith.constant 0 : index
    %c1_53 = arith.constant 1 : index
    %c4_54 = arith.constant 4 : index
    %39 = vector.load %arg1[%c0_52, %c1_53, %c4_54] : memref<1x3x138xf32, #tpu.memory_space<vmem>>, vector<1x1x128xf32>
    %40 = vector.shape_cast %39 : vector<1x1x128xf32> to vector<1x128xf32>
    %c13 = arith.constant 13 : index
    %c0_55 = arith.constant 0 : index
    %41 = vector.load %arg5[%c13, %c0_55] : memref<33x128xf32, #tpu.memory_space<vmem>>, vector<1x128xf32>
    tpu.vector_store %arg5[%c13, %c0_55], %40 {strides = array<i32>} : memref<33x128xf32, #tpu.memory_space<vmem>>, vector<1x128xf32>,
    %c0_56 = arith.constant 0 : index
    %c2_57 = arith.constant 2 : index
    %c4_58 = arith.constant 4 : index
    %42 = vector.load %arg1[%c0_56, %c2_57, %c4_58] : memref<1x3x138xf32, #tpu.memory_space<vmem>>, vector<1x1x128xf32>
    %43 = vector.shape_cast %42 : vector<1x1x128xf32> to vector<1x128xf32>
    %c14 = arith.constant 14 : index
    %c0_59 = arith.constant 0 : index
    %44 = vector.load %arg5[%c14, %c0_59] : memref<33x128xf32, #tpu.memory_space<vmem>>, vector<1x128xf32>
    tpu.vector_store %arg5[%c14, %c0_59], %43 {strides = array<i32>} : memref<33x128xf32, #tpu.memory_space<vmem>>, vector<1x128xf32>,
    %c0_60 = arith.constant 0 : index
    %c0_61 = arith.constant 0 : index
    %c5_62 = arith.constant 5 : index
    %45 = vector.load %arg1[%c0_60, %c0_61, %c5_62] : memref<1x3x138xf32, #tpu.memory_space<vmem>>, vector<1x1x128xf32>
    %46 = vector.shape_cast %45 : vector<1x1x128xf32> to vector<1x128xf32>
    %c15 = arith.constant 15 : index
    %c0_63 = arith.constant 0 : index
    %47 = vector.load %arg5[%c15, %c0_63] : memref<33x128xf32, #tpu.memory_space<vmem>>, vector<1x128xf32>
    tpu.vector_store %arg5[%c15, %c0_63], %46 {strides = array<i32>} : memref<33x128xf32, #tpu.memory_space<vmem>>, vector<1x128xf32>,
    %c0_64 = arith.constant 0 : index
    %c1_65 = arith.constant 1 : index
    %c5_66 = arith.constant 5 : index
    %48 = vector.load %arg1[%c0_64, %c1_65, %c5_66] : memref<1x3x138xf32, #tpu.memory_space<vmem>>, vector<1x1x128xf32>
    %49 = vector.shape_cast %48 : vector<1x1x128xf32> to vector<1x128xf32>
    %c16 = arith.constant 16 : index
    %c0_67 = arith.constant 0 : index
    %50 = vector.load %arg5[%c16, %c0_67] : memref<33x128xf32, #tpu.memory_space<vmem>>, vector<1x128xf32>
    tpu.vector_store %arg5[%c16, %c0_67], %49 {strides = array<i32>} : memref<33x128xf32, #tpu.memory_space<vmem>>, vector<1x128xf32>,
    %c0_68 = arith.constant 0 : index
    %c2_69 = arith.constant 2 : index
    %c5_70 = arith.constant 5 : index
    %51 = vector.load %arg1[%c0_68, %c2_69, %c5_70] : memref<1x3x138xf32, #tpu.memory_space<vmem>>, vector<1x1x128xf32>
    %52 = vector.shape_cast %51 : vector<1x1x128xf32> to vector<1x128xf32>
    %c17 = arith.constant 17 : index
    %c0_71 = arith.constant 0 : index
    %53 = vector.load %arg5[%c17, %c0_71] : memref<33x128xf32, #tpu.memory_space<vmem>>, vector<1x128xf32>
    tpu.vector_store %arg5[%c17, %c0_71], %52 {strides = array<i32>} : memref<33x128xf32, #tpu.memory_space<vmem>>, vector<1x128xf32>,
    %c0_72 = arith.constant 0 : index
    %c0_73 = arith.constant 0 : index
    %c6_74 = arith.constant 6 : index
    %54 = vector.load %arg1[%c0_72, %c0_73, %c6_74] : memref<1x3x138xf32, #tpu.memory_space<vmem>>, vector<1x1x128xf32>
    %55 = vector.shape_cast %54 : vector<1x1x128xf32> to vector<1x128xf32>
    %c18 = arith.constant 18 : index
    %c0_75 = arith.constant 0 : index
    %56 = vector.load %arg5[%c18, %c0_75] : memref<33x128xf32, #tpu.memory_space<vmem>>, vector<1x128xf32>
    tpu.vector_store %arg5[%c18, %c0_75], %55 {strides = array<i32>} : memref<33x128xf32, #tpu.memory_space<vmem>>, vector<1x128xf32>,
    %c0_76 = arith.constant 0 : index
    %c1_77 = arith.constant 1 : index
    %c6_78 = arith.constant 6 : index
    %57 = vector.load %arg1[%c0_76, %c1_77, %c6_78] : memref<1x3x138xf32, #tpu.memory_space<vmem>>, vector<1x1x128xf32>
    %58 = vector.shape_cast %57 : vector<1x1x128xf32> to vector<1x128xf32>
    %c19 = arith.constant 19 : index
    %c0_79 = arith.constant 0 : index
    %59 = vector.load %arg5[%c19, %c0_79] : memref<33x128xf32, #tpu.memory_space<vmem>>, vector<1x128xf32>
    tpu.vector_store %arg5[%c19, %c0_79], %58 {strides = array<i32>} : memref<33x128xf32, #tpu.memory_space<vmem>>, vector<1x128xf32>,
    %c0_80 = arith.constant 0 : index
    %c2_81 = arith.constant 2 : index
    %c6_82 = arith.constant 6 : index
    %60 = vector.load %arg1[%c0_80, %c2_81, %c6_82] : memref<1x3x138xf32, #tpu.memory_space<vmem>>, vector<1x1x128xf32>
    %61 = vector.shape_cast %60 : vector<1x1x128xf32> to vector<1x128xf32>
    %c20 = arith.constant 20 : index
    %c0_83 = arith.constant 0 : index
    %62 = vector.load %arg5[%c20, %c0_83] : memref<33x128xf32, #tpu.memory_space<vmem>>, vector<1x128xf32>
    tpu.vector_store %arg5[%c20, %c0_83], %61 {strides = array<i32>} : memref<33x128xf32, #tpu.memory_space<vmem>>, vector<1x128xf32>,
    %c0_84 = arith.constant 0 : index
    %c0_85 = arith.constant 0 : index
    %c7_86 = arith.constant 7 : index
    %63 = vector.load %arg1[%c0_84, %c0_85, %c7_86] : memref<1x3x138xf32, #tpu.memory_space<vmem>>, vector<1x1x128xf32>
    %64 = vector.shape_cast %63 : vector<1x1x128xf32> to vector<1x128xf32>
    %c21 = arith.constant 21 : index
    %c0_87 = arith.constant 0 : index
    %65 = vector.load %arg5[%c21, %c0_87] : memref<33x128xf32, #tpu.memory_space<vmem>>, vector<1x128xf32>
    tpu.vector_store %arg5[%c21, %c0_87], %64 {strides = array<i32>} : memref<33x128xf32, #tpu.memory_space<vmem>>, vector<1x128xf32>,
    %c0_88 = arith.constant 0 : index
    %c1_89 = arith.constant 1 : index
    %c7_90 = arith.constant 7 : index
    %66 = vector.load %arg1[%c0_88, %c1_89, %c7_90] : memref<1x3x138xf32, #tpu.memory_space<vmem>>, vector<1x1x128xf32>
    %67 = vector.shape_cast %66 : vector<1x1x128xf32> to vector<1x128xf32>
    %c22 = arith.constant 22 : index
    %c0_91 = arith.constant 0 : index
    %68 = vector.load %arg5[%c22, %c0_91] : memref<33x128xf32, #tpu.memory_space<vmem>>, vector<1x128xf32>
    tpu.vector_store %arg5[%c22, %c0_91], %67 {strides = array<i32>} : memref<33x128xf32, #tpu.memory_space<vmem>>, vector<1x128xf32>,
    %c0_92 = arith.constant 0 : index
    %c2_93 = arith.constant 2 : index
    %c7_94 = arith.constant 7 : index
    %69 = vector.load %arg1[%c0_92, %c2_93, %c7_94] : memref<1x3x138xf32, #tpu.memory_space<vmem>>, vector<1x1x128xf32>
    %70 = vector.shape_cast %69 : vector<1x1x128xf32> to vector<1x128xf32>
    %c23 = arith.constant 23 : index
    %c0_95 = arith.constant 0 : index
    %71 = vector.load %arg5[%c23, %c0_95] : memref<33x128xf32, #tpu.memory_space<vmem>>, vector<1x128xf32>
    tpu.vector_store %arg5[%c23, %c0_95], %70 {strides = array<i32>} : memref<33x128xf32, #tpu.memory_space<vmem>>, vector<1x128xf32>,
    %c0_96 = arith.constant 0 : index
    %c0_97 = arith.constant 0 : index
    %c8_98 = arith.constant 8 : index
    %72 = vector.load %arg1[%c0_96, %c0_97, %c8_98] : memref<1x3x138xf32, #tpu.memory_space<vmem>>, vector<1x1x128xf32>
    %73 = vector.shape_cast %72 : vector<1x1x128xf32> to vector<1x128xf32>
    %c24 = arith.constant 24 : index
    %c0_99 = arith.constant 0 : index
    %74 = vector.load %arg5[%c24, %c0_99] : memref<33x128xf32, #tpu.memory_space<vmem>>, vector<1x128xf32>
    tpu.vector_store %arg5[%c24, %c0_99], %73 {strides = array<i32>} : memref<33x128xf32, #tpu.memory_space<vmem>>, vector<1x128xf32>,
    %c0_100 = arith.constant 0 : index
    %c1_101 = arith.constant 1 : index
    %c8_102 = arith.constant 8 : index
    %75 = vector.load %arg1[%c0_100, %c1_101, %c8_102] : memref<1x3x138xf32, #tpu.memory_space<vmem>>, vector<1x1x128xf32>
    %76 = vector.shape_cast %75 : vector<1x1x128xf32> to vector<1x128xf32>
    %c25 = arith.constant 25 : index
    %c0_103 = arith.constant 0 : index
    %77 = vector.load %arg5[%c25, %c0_103] : memref<33x128xf32, #tpu.memory_space<vmem>>, vector<1x128xf32>
    tpu.vector_store %arg5[%c25, %c0_103], %76 {strides = array<i32>} : memref<33x128xf32, #tpu.memory_space<vmem>>, vector<1x128xf32>,
    %c0_104 = arith.constant 0 : index
    %c2_105 = arith.constant 2 : index
    %c8_106 = arith.constant 8 : index
    %78 = vector.load %arg1[%c0_104, %c2_105, %c8_106] : memref<1x3x138xf32, #tpu.memory_space<vmem>>, vector<1x1x128xf32>
    %79 = vector.shape_cast %78 : vector<1x1x128xf32> to vector<1x128xf32>
    %c26 = arith.constant 26 : index
    %c0_107 = arith.constant 0 : index
    %80 = vector.load %arg5[%c26, %c0_107] : memref<33x128xf32, #tpu.memory_space<vmem>>, vector<1x128xf32>
    tpu.vector_store %arg5[%c26, %c0_107], %79 {strides = array<i32>} : memref<33x128xf32, #tpu.memory_space<vmem>>, vector<1x128xf32>,
    %c0_108 = arith.constant 0 : index
    %c0_109 = arith.constant 0 : index
    %c9_110 = arith.constant 9 : index
    %81 = vector.load %arg1[%c0_108, %c0_109, %c9_110] : memref<1x3x138xf32, #tpu.memory_space<vmem>>, vector<1x1x128xf32>
    %82 = vector.shape_cast %81 : vector<1x1x128xf32> to vector<1x128xf32>
    %c27 = arith.constant 27 : index
    %c0_111 = arith.constant 0 : index
    %83 = vector.load %arg5[%c27, %c0_111] : memref<33x128xf32, #tpu.memory_space<vmem>>, vector<1x128xf32>
    tpu.vector_store %arg5[%c27, %c0_111], %82 {strides = array<i32>} : memref<33x128xf32, #tpu.memory_space<vmem>>, vector<1x128xf32>,
    %c0_112 = arith.constant 0 : index
    %c1_113 = arith.constant 1 : index
    %c9_114 = arith.constant 9 : index
    %84 = vector.load %arg1[%c0_112, %c1_113, %c9_114] : memref<1x3x138xf32, #tpu.memory_space<vmem>>, vector<1x1x128xf32>
    %85 = vector.shape_cast %84 : vector<1x1x128xf32> to vector<1x128xf32>
    %c28 = arith.constant 28 : index
    %c0_115 = arith.constant 0 : index
    %86 = vector.load %arg5[%c28, %c0_115] : memref<33x128xf32, #tpu.memory_space<vmem>>, vector<1x128xf32>
    tpu.vector_store %arg5[%c28, %c0_115], %85 {strides = array<i32>} : memref<33x128xf32, #tpu.memory_space<vmem>>, vector<1x128xf32>,
    %c0_116 = arith.constant 0 : index
    %c2_117 = arith.constant 2 : index
    %c9_118 = arith.constant 9 : index
    %87 = vector.load %arg1[%c0_116, %c2_117, %c9_118] : memref<1x3x138xf32, #tpu.memory_space<vmem>>, vector<1x1x128xf32>
    %88 = vector.shape_cast %87 : vector<1x1x128xf32> to vector<1x128xf32>
    %c29 = arith.constant 29 : index
    %c0_119 = arith.constant 0 : index
    %89 = vector.load %arg5[%c29, %c0_119] : memref<33x128xf32, #tpu.memory_space<vmem>>, vector<1x128xf32>
    tpu.vector_store %arg5[%c29, %c0_119], %88 {strides = array<i32>} : memref<33x128xf32, #tpu.memory_space<vmem>>, vector<1x128xf32>,
    %c0_120 = arith.constant 0 : index
    %c0_121 = arith.constant 0 : index
    %c10_122 = arith.constant 10 : index
    %90 = vector.load %arg1[%c0_120, %c0_121, %c10_122] : memref<1x3x138xf32, #tpu.memory_space<vmem>>, vector<1x1x128xf32>
    %91 = vector.shape_cast %90 : vector<1x1x128xf32> to vector<1x128xf32>
    %c30 = arith.constant 30 : index
    %c0_123 = arith.constant 0 : index
    %92 = vector.load %arg5[%c30, %c0_123] : memref<33x128xf32, #tpu.memory_space<vmem>>, vector<1x128xf32>
    tpu.vector_store %arg5[%c30, %c0_123], %91 {strides = array<i32>} : memref<33x128xf32, #tpu.memory_space<vmem>>, vector<1x128xf32>,
    %c0_124 = arith.constant 0 : index
    %c1_125 = arith.constant 1 : index
    %c10_126 = arith.constant 10 : index
    %93 = vector.load %arg1[%c0_124, %c1_125, %c10_126] : memref<1x3x138xf32, #tpu.memory_space<vmem>>, vector<1x1x128xf32>
    %94 = vector.shape_cast %93 : vector<1x1x128xf32> to vector<1x128xf32>
    %c31 = arith.constant 31 : index
    %c0_127 = arith.constant 0 : index
    %95 = vector.load %arg5[%c31, %c0_127] : memref<33x128xf32, #tpu.memory_space<vmem>>, vector<1x128xf32>
    tpu.vector_store %arg5[%c31, %c0_127], %94 {strides = array<i32>} : memref<33x128xf32, #tpu.memory_space<vmem>>, vector<1x128xf32>,
    %c0_128 = arith.constant 0 : index
    %c2_129 = arith.constant 2 : index
    %c10_130 = arith.constant 10 : index
    %96 = vector.load %arg1[%c0_128, %c2_129, %c10_130] : memref<1x3x138xf32, #tpu.memory_space<vmem>>, vector<1x1x128xf32>
    %97 = vector.shape_cast %96 : vector<1x1x128xf32> to vector<1x128xf32>
    %c32 = arith.constant 32 : index
    %c0_131 = arith.constant 0 : index
    %98 = vector.load %arg5[%c32, %c0_131] : memref<33x128xf32, #tpu.memory_space<vmem>>, vector<1x128xf32>
    tpu.vector_store %arg5[%c32, %c0_131], %97 {strides = array<i32>} : memref<33x128xf32, #tpu.memory_space<vmem>>, vector<1x128xf32>,
    %c0_132 = arith.constant 0 : index
    %c0_133 = arith.constant 0 : index
    %99 = vector.load %arg2[%c0_132, %c0_133] : memref<72x33xf32, #tpu.memory_space<vmem>>, vector<72x33xf32>
    %c0_134 = arith.constant 0 : index
    %c0_135 = arith.constant 0 : index
    %100 = vector.load %arg5[%c0_134, %c0_135] : memref<33x128xf32, #tpu.memory_space<vmem>>, vector<33x128xf32>
    %cst = arith.constant dense<0.000000e+00> : vector<72x128xf32>
    %101 = tpu.matmul %99, %100, %cst {dimension_numbers = #tpu.dot_dimension_numbers<[1], [0], [0], [1], [0, 0, 1, 1], [], []>} : vector<72x33xf32>, vector<33x128xf32>, vector<72x128xf32> -> vector<72x128xf32>
    %102 = math.absf %101 : vector<72x128xf32>
    %103 = vector.extract_strided_slice %102 {offsets = [0, 0], sizes = [8, 128], strides = [1, 1]} : vector<72x128xf32> to vector<8x128xf32>
    %104 = vector.extract_strided_slice %102 {offsets = [8, 0], sizes = [8, 128], strides = [1, 1]} : vector<72x128xf32> to vector<8x128xf32>
    %105 = arith.maximumf %103, %104 : vector<8x128xf32>
    %106 = vector.extract_strided_slice %102 {offsets = [16, 0], sizes = [8, 128], strides = [1, 1]} : vector<72x128xf32> to vector<8x128xf32>
    %107 = arith.maximumf %105, %106 : vector<8x128xf32>
    %108 = vector.extract_strided_slice %102 {offsets = [24, 0], sizes = [8, 128], strides = [1, 1]} : vector<72x128xf32> to vector<8x128xf32>
    %109 = arith.maximumf %107, %108 : vector<8x128xf32>
    %110 = vector.extract_strided_slice %102 {offsets = [32, 0], sizes = [8, 128], strides = [1, 1]} : vector<72x128xf32> to vector<8x128xf32>
    %111 = arith.maximumf %109, %110 : vector<8x128xf32>
    %112 = vector.extract_strided_slice %102 {offsets = [40, 0], sizes = [8, 128], strides = [1, 1]} : vector<72x128xf32> to vector<8x128xf32>
    %113 = arith.maximumf %111, %112 : vector<8x128xf32>
    %114 = vector.extract_strided_slice %102 {offsets = [48, 0], sizes = [8, 128], strides = [1, 1]} : vector<72x128xf32> to vector<8x128xf32>
    %115 = arith.maximumf %113, %114 : vector<8x128xf32>
    %116 = vector.extract_strided_slice %102 {offsets = [56, 0], sizes = [8, 128], strides = [1, 1]} : vector<72x128xf32> to vector<8x128xf32>
    %117 = arith.maximumf %115, %116 : vector<8x128xf32>
    %118 = vector.extract_strided_slice %102 {offsets = [64, 0], sizes = [8, 128], strides = [1, 1]} : vector<72x128xf32> to vector<8x128xf32>
    %119 = arith.maximumf %117, %118 : vector<8x128xf32>
    %c0_136 = arith.constant 0 : index
    %120 = memref.load %arg3[%c0_136] : memref<2xf32, #tpu.memory_space<smem>>
    %121 = vector.broadcast %120 : f32 to vector<8x128xf32>
    %122 = arith.mulf %119, %121 : vector<8x128xf32>
    %c1_137 = arith.constant 1 : index
    %123 = memref.load %arg3[%c1_137] : memref<2xf32, #tpu.memory_space<smem>>
    %124 = vector.broadcast %123 : f32 to vector<8x128xf32>
    %125 = arith.addf %122, %124 : vector<8x128xf32>
    %cst_138 = arith.constant 0.000000e+00 : f32
    %126 = vector.broadcast %cst_138 : f32 to vector<8x128xf32>
    %127 = arith.minimumf %125, %126 : vector<8x128xf32>
    %128 = math.exp %127 : vector<8x128xf32>
    %cst_139 = arith.constant 1.000000e+00 : f32
    %129 = vector.broadcast %cst_139 : f32 to vector<8x128xf32>
    %130 = arith.subf %128, %129 : vector<8x128xf32>
    %cst_140 = arith.constant 1.67326319 : f32
    %131 = vector.broadcast %cst_140 : f32 to vector<8x128xf32>
    %132 = arith.mulf %131, %130 : vector<8x128xf32>
    %cst_141 = arith.constant 0.000000e+00 : f32
    %133 = vector.broadcast %cst_141 : f32 to vector<8x128xf32>
    %134 = arith.cmpf ogt, %125, %133 : vector<8x128xf32>
    %135 = arith.select %134, %125, %132 : vector<8x128xi1>, vector<8x128xf32>
    %cst_142 = arith.constant 1.05070102 : f32
    %136 = vector.broadcast %cst_142 : f32 to vector<8x128xf32>
    %137 = arith.mulf %136, %135 : vector<8x128xf32>
    %c0_143 = arith.constant 0 : index
    %c0_144 = arith.constant 0 : index
    %c0_145 = arith.constant 0 : index
    %c0_146 = arith.constant 0 : index
    %138 = vector.load %arg4[%c0_143, %c0_144, %c0_145, %c0_146] : memref<1x1x8x128xf32, #tpu.memory_space<vmem>>, vector<1x1x8x128xf32>
    %139 = vector.shape_cast %138 : vector<1x1x8x128xf32> to vector<8x128xf32>
    %140 = vector.shape_cast %137 : vector<8x128xf32> to vector<1x1x8x128xf32>
    tpu.vector_store %arg4[%c0_143, %c0_144, %c0_145, %c0_146], %140 {strides = array<i32>} : memref<1x1x8x128xf32, #tpu.memory_space<vmem>>, vector<1x1x8x128xf32>,
    return
  }
  func.func @transform_0(%arg0: i32) -> (i32, i32, i32) {
    %c0_i32 = arith.constant 0 : i32
    %c0_i32_0 = arith.constant 0 : i32
    %c0_i32_1 = arith.constant 0 : i32
    return %arg0, %c0_i32, %c0_i32_0 : i32, i32, i32
  }
  func.func @transform_1(%arg0: i32) -> (i32, i32) {
    %c0_i32 = arith.constant 0 : i32
    %c0_i32_0 = arith.constant 0 : i32
    %c0_i32_1 = arith.constant 0 : i32
    return %c0_i32, %c0_i32_0 : i32, i32
  }
  func.func @transform_2(%arg0: i32) -> i32 {
    %c0_i32 = arith.constant 0 : i32
    %c0_i32_0 = arith.constant 0 : i32
    return %c0_i32 : i32
  }
  func.func @transform_3(%arg0: i32) -> (i32, i32, i32, i32) {
    %c0_i32 = arith.constant 0 : i32
    %c0_i32_0 = arith.constant 0 : i32
    %c0_i32_1 = arith.constant 0 : i32
    %c0_i32_2 = arith.constant 0 : i32
    return %arg0, %c0_i32, %c0_i32_0, %c0_i32_1 : i32, i32, i32, i32
  }
}

</mosaic_0001>

<llo_original>
// kernel: tpu_custom_call.1
$region0: #{tpu_custom_call.1}
  #allocation0 [shape = 'u32[]', space=smem, size = 0x4, offset = 0x4, fixed_abs, tag = 'smem constant byte address 0x4 - core index']
  #allocation1 [shape = 'u32[144,128]{1,0:T(1,128)}', space=vmem, size = 0x12000, scoped, tag = 'internal scratch']
  #allocation2 [shape = 'f32[33,128]{1,0:T(8,128)}', space=vmem, size = 0x5000, scoped, tag = 'scratch operand']
  %s0 = inlined_call_operand.vmem [shape: f32[2,3,138], index: 0, kind: input, shape index: {}]
  %s1 = inlined_call_operand.vmem [shape: f32[72,33], index: 1, kind: input, shape index: {}]
  %s2 = inlined_call_operand.vmem [shape: f32[2], index: 2, kind: input, shape index: {}]
  %s3 = inlined_call_operand.hbm [shape: f32[2,1,8,128], index: 3, kind: output, shape index: {}]
  %s4 = sld [smem:[#allocation0]]
  $region49: #{tpu_custom_call.1} parent=0
    _
  %s6 = ssub.s32 1, %s4
  %s7 = scalar_select 0, %s6, %s4
  $region1: #{tpu_custom_call.1} parent=0
    #allocation3 [shape = 'u8[512]{0}', space=smem, size = 0x200, scoped, tag = 'input window, operand 2, single buffered']
    #allocation4 [shape = 's32[2]{0}', space=sflag, size = 0x8, scoped, tag = 'scoped memory for tpu_custom_call.1']
    #allocation5 [shape = 's32[2]{0}', space=sflag, size = 0x8, scoped, tag = 'scoped memory for tpu_custom_call.1']
    #allocation6 [shape = 'u8[8192]{0}', space=vmem, size = 0x2000, scoped, tag = 'output window, operand 0']
    %8 = vsyncpa [#allocation5], 0
    %9 = vsyncpa [#allocation4], 0
    %s10 = scalar_lea.sflag [#allocation4], 1
    %11 = vsyncpa %s10, 0
    loop: start=0, step=1, limit=4
    $region2: #{tpu_custom_call.1} parent=1 // loop_pre_header
      _
    $region3: #{tpu_custom_call.1} parent=1 // loop_header
      %s13 = sphi 0, %s17
      %p14 = scmp.ge.s32.totalorder %s13, 4
      %s23 = sphi 0, %s25
      %s26 = sphi 0, %s23
      %s27 = sphi 0, %s26
      %s43 = sphi 0, %s27
      %s47 = sphi 0, %s47
      %s49 = sphi 0, %s47
      %s50 = sphi 0, %s49
      %s64 = sphi 0, %s50
      %s68 = sphi 0, %s68
      %s70 = sphi 0, %s68
      %s71 = sphi 0, %s70
      %s85 = sphi 0, %s71
      %s91 = sphi 0, %s93
      %s94 = sphi 0, %s91
      %s95 = sphi 0, %s94
      %s111 = sphi 0, %s95
    $region4: #{tpu_custom_call.1} parent=1 // loop_header_branch
      %16 = sbr.rel (%p14) target = $region8
    $region5: #{tpu_custom_call.1} parent=1 // loop_body
      %s18 = ssub.s32 %s13, 1
      %s19 = ssub.s32 %s13, 2
      %s20 = sadd.s32 %s13, 1
      %s21 = ssub.s32 %s13, %s20
      %p22 = scmp.eq.s32.totalorder %s21, 0
      %s24 = sadd.s32 %s23, 1
      %s25 = scalar_select %p22, %s23, %s24
      %p28 = pneg %p22
      %p29 = scmp.eq.s32.totalorder %s13, 1
      %p30 = por %p28, %p29
      %p31 = scmp.ne.s32.totalorder %s23, %s26
      %p32 = scmp.eq.s32.totalorder %s13, 0
      %p33 = por %p31, %p32
      %p34 = scmp.ne.s32.totalorder %s23, %s26
      %p35 = scmp.eq.s32.totalorder %s18, 1
      %p36 = por %p34, %p35
      %p37 = scmp.ne.s32.totalorder %s26, %s27
      %p38 = scmp.eq.s32.totalorder %s18, 0
      %p39 = por %p37, %p38
      %p40 = scmp.ne.s32.totalorder %s26, %s27
      %p41 = scmp.eq.s32.totalorder %s19, 1
      %p42 = por %p40, %p41
      %p44 = scmp.ne.s32.totalorder %s27, %s43
      %p45 = scmp.eq.s32.totalorder %s19, 0
      %p46 = por %p44, %p45
      %s48 = sadd.s32 %s47, 1
      %p51 = scmp.eq.s32.totalorder %s13, 1
      %p52 = scmp.ne.s32.totalorder %s47, %s49
      %p53 = scmp.eq.s32.totalorder %s13, 0
      %p54 = por %p52, %p53
      %p55 = scmp.ne.s32.totalorder %s47, %s49
      %p56 = scmp.eq.s32.totalorder %s18, 1
      %p57 = por %p55, %p56
      %p58 = scmp.ne.s32.totalorder %s49, %s50
      %p59 = scmp.eq.s32.totalorder %s18, 0
      %p60 = por %p58, %p59
      %p61 = scmp.ne.s32.totalorder %s49, %s50
      %p62 = scmp.eq.s32.totalorder %s19, 1
      %p63 = por %p61, %p62
      %p65 = scmp.ne.s32.totalorder %s50, %s64
      %p66 = scmp.eq.s32.totalorder %s19, 0
      %p67 = por %p65, %p66
      %s69 = sadd.s32 %s68, 1
      %p72 = scmp.eq.s32.totalorder %s13, 1
      %p73 = scmp.ne.s32.totalorder %s68, %s70
      %p74 = scmp.eq.s32.totalorder %s13, 0
      %p75 = por %p73, %p74
      %p76 = scmp.ne.s32.totalorder %s68, %s70
      %p77 = scmp.eq.s32.totalorder %s18, 1
      %p78 = por %p76, %p77
      %p79 = scmp.ne.s32.totalorder %s70, %s71
      %p80 = scmp.eq.s32.totalorder %s18, 0
      %p81 = por %p79, %p80
      %p82 = scmp.ne.s32.totalorder %s70, %s71
      %p83 = scmp.eq.s32.totalorder %s19, 1
      %p84 = por %p82, %p83
      %p86 = scmp.ne.s32.totalorder %s71, %s85
      %p87 = scmp.eq.s32.totalorder %s19, 0
      %p88 = por %p86, %p87
      %s89 = ssub.s32 %s13, %s20
      %p90 = scmp.eq.s32.totalorder %s89, 0
      %s92 = sadd.s32 %s91, 1
      %s93 = scalar_select %p90, %s91, %s92
      %p96 = pneg %p90
      %p97 = scmp.eq.s32.totalorder %s13, 1
      %p98 = por %p96, %p97
      %p99 = scmp.ne.s32.totalorder %s91, %s94
      %p100 = scmp.eq.s32.totalorder %s13, 0
      %p101 = por %p99, %p100
      %p102 = scmp.ne.s32.totalorder %s91, %s94
      %p103 = scmp.eq.s32.totalorder %s18, 1
      %p104 = por %p102, %p103
      %p105 = scmp.ne.s32.totalorder %s94, %s95
      %p106 = scmp.eq.s32.totalorder %s18, 0
      %p107 = por %p105, %p106
      %p108 = scmp.ne.s32.totalorder %s94, %s95
      %p109 = scmp.eq.s32.totalorder %s19, 1
      %p110 = por %p108, %p109
      %p112 = scmp.ne.s32.totalorder %s95, %s111
      %p113 = scmp.eq.s32.totalorder %s19, 0
      %p114 = por %p112, %p113
      %p115 = scmp.le.s32.totalorder 1, %s13
      %p116 = scmp.lt.s32.totalorder %s13, 3
      %p117 = pnand %p115, %p116
      %p118 = pneg %p117
      // Predicated region
      $region9: #{tpu_custom_call.1} parent=5 // pred_check
        _
      $region10: #{tpu_custom_call.1} parent=5 // pred_check_branch
        %120 = sbr.rel (%p117) target = $region12
      $region11: #{tpu_custom_call.1} parent=5 // pred_region
        %s121 = ssub.s32 %s13, 1
        // Predicated region
        $region13: #{tpu_custom_call.1} parent=11 // pred_check
          %p122 = pneg %p60
        $region14: #{tpu_custom_call.1} parent=11 // pred_check_branch
          %124 = sbr.rel (%p122) target = $region16
        $region15: #{tpu_custom_call.1} parent=11 // pred_region
          _
        $region16: #{tpu_custom_call.1} parent=11 // pred_fallthru
          _
        // Predicated region
        $region17: #{tpu_custom_call.1} parent=11 // pred_check
          %p125 = pneg %p81
        $region18: #{tpu_custom_call.1} parent=11 // pred_check_branch
          %127 = sbr.rel (%p125) target = $region20
        $region19: #{tpu_custom_call.1} parent=11 // pred_region
          %s129 = ssub.s32 16, 16
          %130 = vsyncadd [#allocation5], %s129
          %s132 = sshll.u32 %s2, 4
          %s133 = int_to_ptr.vmem [resolvable:$true] %s132
          %135 = dma.vmem_to_smem %s133, 16, [#allocation3], [#allocation5]
        $region20: #{tpu_custom_call.1} parent=11 // pred_fallthru
          _
      $region12: #{tpu_custom_call.1} parent=5 // pred_fallthru
        _
      %p136 = scmp.lt.s32.totalorder %s13, 2
      // Predicated region
      $region21: #{tpu_custom_call.1} parent=5 // pred_check
        %p137 = pneg %p136
      $region22: #{tpu_custom_call.1} parent=5 // pred_check_branch
        %139 = sbr.rel (%p137) target = $region24
      $region23: #{tpu_custom_call.1} parent=5 // pred_region
        // Predicated region
        $region25: #{tpu_custom_call.1} parent=23 // pred_check
          %p140 = pneg %p33
        $region26: #{tpu_custom_call.1} parent=23 // pred_check_branch
          %142 = sbr.rel (%p140) target = $region28
        $region27: #{tpu_custom_call.1} parent=23 // pred_region
          %p143 = scmp.lt.s32.totalorder %s13, 1
          %s144 = scalar_select %p143, %s13, 1
          %s145 = smul.addr %s144, 2
          %s146 = smul.addr %s145, 4
          %s147 = scalar_lea.vmem %s0, %s146
        $region28: #{tpu_custom_call.1} parent=23 // pred_fallthru
          _
      $region24: #{tpu_custom_call.1} parent=5 // pred_fallthru
        _
      %p148 = scmp.le.s32.totalorder 1, %s13
      %p149 = scmp.lt.s32.totalorder %s13, 3
      %p150 = pnand %p148, %p149
      %p151 = pneg %p150
      // Predicated region
      $region29: #{tpu_custom_call.1} parent=5 // pred_check
        _
      $region30: #{tpu_custom_call.1} parent=5 // pred_check_branch
        %153 = sbr.rel (%p150) target = $region32
      $region31: #{tpu_custom_call.1} parent=5 // pred_region
        %s154 = ssub.s32 %s13, 1
        // Predicated region
        $region33: #{tpu_custom_call.1} parent=31 // pred_check
          %p155 = pneg %p81
        $region34: #{tpu_custom_call.1} parent=31 // pred_check_branch
          %157 = sbr.rel (%p155) target = $region36
        $region35: #{tpu_custom_call.1} parent=31 // pred_region
          %158 = dma.done [#allocation5], 16
        $region36: #{tpu_custom_call.1} parent=31 // pred_fallthru
          _
        %159 = sfence
        %p160 = scmp.lt.s32.totalorder %s18, 1
        %s161 = scalar_select %p160, %s18, 1
        %s162 = smul.addr %s161, 2
        %s163 = smul.addr %s162, 4
        %s164 = scalar_lea.vmem %s0, %s163
        %p165 = pneg %p39
        %p166 = pneg %p36
        %p167 = pneg %p60
        %p168 = pneg %p57
        %p169 = pneg %p81
        %p170 = pneg %p78
        %p171 = pneg %p107
        %p172 = pneg %p104
        %s173 = sand.u32 %s94, 1
        %s174 = scalar_lea.sflag [#allocation4], %s173
        %s175 = sand.u32 %s94, 1
        %s176 = smul.addr %s175, 8
        %s177 = scalar_lea.vmem [#allocation6], %s176
        %p178 = scmp.lt.s32.totalorder %s18, 1
        %s179 = scalar_select %p178, %s18, 1
        %s180 = smul.addr %s179, 2
        %s181 = smul.addr %s180, 4
        %s182 = scalar_lea.vmem %s0, %s181
        %v183 = vld [vmem:[%s182] sm:$0x1]
        %184 = vst [vmem:[#allocation2] sm:$0x1] %v183
        %v185 = vld [vmem:[%s182 + $0x1] sm:$0x1]
        %186 = vst [vmem:[#allocation2 + $0x1] sm:$0x1] %v185
        %v187 = vld [vmem:[%s182 + $0x2] sm:$0x1]
        %188 = vst [vmem:[#allocation2 + $0x2] sm:$0x1] %v187
        %v189 = vld [vmem:[%s182] sm:$0x11]
        %v191 = vlaneseq
        %v192 = vshrl.u32 %v191, 7
        %v193 = vsub.s32 0, %v192
        %v194 = vrot.slane %v189, %v193
        %v195 = vlaneseq
        %v196 = vshrl.u32 %v195, 7
        %v197 = vsub.s32 4, %v196
        %v198 = vrot.slane %v189, %v197
        %199 = vrot.lane.b32.xlu0 %v194, 127
        %v200 = vpop.permute.xlu0 %199
        %201 = vrot.lane.b32.xlu0 %v198, 127
        %v202 = vpop.permute.xlu0 %201
        %vm203 = vcmask 1039360
        %v204 = vsel %vm203, %v200, %v202
        %206 = vst [vmem:[#allocation2 + $0x3] sm:$0x1] %v204
        %v207 = vld [vmem:[%s182 + $0x1] sm:$0x11]
        %v209 = vlaneseq
        %v210 = vshrl.u32 %v209, 7
        %v211 = vsub.s32 0, %v210
        %v212 = vrot.slane %v207, %v211
        %v213 = vlaneseq
        %v214 = vshrl.u32 %v213, 7
        %v215 = vsub.s32 4, %v214
        %v216 = vrot.slane %v207, %v215
        %217 = vrot.lane.b32.xlu0 %v212, 127
        %v218 = vpop.permute.xlu0 %217
        %219 = vrot.lane.b32.xlu0 %v216, 127
        %v220 = vpop.permute.xlu0 %219
        %v221 = vsel %vm203, %v218, %v220
        %223 = vst [vmem:[#allocation2 + $0x4] sm:$0x1] %v221
        %v224 = vld [vmem:[%s182 + $0x2] sm:$0x11]
        %v226 = vlaneseq
        %v227 = vshrl.u32 %v226, 7
        %v228 = vsub.s32 0, %v227
        %v229 = vrot.slane %v224, %v228
        %v230 = vlaneseq
        %v231 = vshrl.u32 %v230, 7
        %v232 = vsub.s32 4, %v231
        %v233 = vrot.slane %v224, %v232
        %234 = vrot.lane.b32.xlu0 %v229, 127
        %v235 = vpop.permute.xlu0 %234
        %236 = vrot.lane.b32.xlu0 %v233, 127
        %v237 = vpop.permute.xlu0 %236
        %v238 = vsel %vm203, %v235, %v237
        %240 = vst [vmem:[#allocation2 + $0x5] sm:$0x1] %v238
        %v241 = vld [vmem:[%s182] sm:$0x11]
        %v243 = vlaneseq
        %v244 = vshrl.u32 %v243, 7
        %v245 = vsub.s32 0, %v244
        %v246 = vrot.slane %v241, %v245
        %v247 = vlaneseq
        %v248 = vshrl.u32 %v247, 7
        %v249 = vsub.s32 4, %v248
        %v250 = vrot.slane %v241, %v249
        %251 = vrot.lane.b32.xlu0 %v246, 126
        %v252 = vpop.permute.xlu0 %251
        %253 = vrot.lane.b32.xlu0 %v250, 126
        %v254 = vpop.permute.xlu0 %253
        %vm255 = vcmask 1031168
        %v256 = vsel %vm255, %v252, %v254
        %258 = vst [vmem:[#allocation2 + $0x6] sm:$0x1] %v256
        %v259 = vld [vmem:[%s182 + $0x1] sm:$0x11]
        %v261 = vlaneseq
        %v262 = vshrl.u32 %v261, 7
        %v263 = vsub.s32 0, %v262
        %v264 = vrot.slane %v259, %v263
        %v265 = vlaneseq
        %v266 = vshrl.u32 %v265, 7
        %v267 = vsub.s32 4, %v266
        %v268 = vrot.slane %v259, %v267
        %269 = vrot.lane.b32.xlu0 %v264, 126
        %v270 = vpop.permute.xlu0 %269
        %271 = vrot.lane.b32.xlu0 %v268, 126
        %v272 = vpop.permute.xlu0 %271
        %v273 = vsel %vm255, %v270, %v272
        %275 = vst [vmem:[#allocation2 + $0x7] sm:$0x1] %v273
        %v276 = vld [vmem:[%s182 + $0x2] sm:$0x11]
        %v278 = vlaneseq
        %v279 = vshrl.u32 %v278, 7
        %v280 = vsub.s32 0, %v279
        %v281 = vrot.slane %v276, %v280
        %v282 = vlaneseq
        %v283 = vshrl.u32 %v282, 7
        %v284 = vsub.s32 4, %v283
        %v285 = vrot.slane %v276, %v284
        %286 = vrot.lane.b32.xlu0 %v281, 126
        %v287 = vpop.permute.xlu0 %286
        %288 = vrot.lane.b32.xlu0 %v285, 126
        %v289 = vpop.permute.xlu0 %288
        %v290 = vsel %vm255, %v287, %v289
        %292 = vst [vmem:[#allocation2 + $0x8] sm:$0x1] %v290
        %v293 = vld [vmem:[%s182] sm:$0x11]
        %v295 = vlaneseq
        %v296 = vshrl.u32 %v295, 7
        %v297 = vsub.s32 0, %v296
        %v298 = vrot.slane %v293, %v297
        %v299 = vlaneseq
        %v300 = vshrl.u32 %v299, 7
        %v301 = vsub.s32 4, %v300
        %v302 = vrot.slane %v293, %v301
        %303 = vrot.lane.b32.xlu0 %v298, 125
        %v304 = vpop.permute.xlu0 %303
        %305 = vrot.lane.b32.xlu0 %v302, 125
        %v306 = vpop.permute.xlu0 %305
        %vm307 = vcmask 1022976
        %v308 = vsel %vm307, %v304, %v306
        %310 = vst [vmem:[#allocation2 + $0x9] sm:$0x1] %v308
        %v311 = vld [vmem:[%s182 + $0x1] sm:$0x11]
        %v313 = vlaneseq
        %v314 = vshrl.u32 %v313, 7
        %v315 = vsub.s32 0, %v314
        %v316 = vrot.slane %v311, %v315
        %v317 = vlaneseq
        %v318 = vshrl.u32 %v317, 7
        %v319 = vsub.s32 4, %v318
        %v320 = vrot.slane %v311, %v319
        %321 = vrot.lane.b32.xlu0 %v316, 125
        %v322 = vpop.permute.xlu0 %321
        %323 = vrot.lane.b32.xlu0 %v320, 125
        %v324 = vpop.permute.xlu0 %323
        %v325 = vsel %vm307, %v322, %v324
        %327 = vst [vmem:[#allocation2 + $0xa] sm:$0x1] %v325
        %v328 = vld [vmem:[%s182 + $0x2] sm:$0x11]
        %v330 = vlaneseq
        %v331 = vshrl.u32 %v330, 7
        %v332 = vsub.s32 0, %v331
        %v333 = vrot.slane %v328, %v332
        %v334 = vlaneseq
        %v335 = vshrl.u32 %v334, 7
        %v336 = vsub.s32 4, %v335
        %v337 = vrot.slane %v328, %v336
        %338 = vrot.lane.b32.xlu0 %v333, 125
        %v339 = vpop.permute.xlu0 %338
        %340 = vrot.lane.b32.xlu0 %v337, 125
        %v341 = vpop.permute.xlu0 %340
        %v342 = vsel %vm307, %v339, %v341
        %344 = vst [vmem:[#allocation2 + $0xb] sm:$0x1] %v342
        %v345 = vld [vmem:[%s182] sm:$0x11]
        %v347 = vlaneseq
        %v348 = vshrl.u32 %v347, 7
        %v349 = vsub.s32 0, %v348
        %v350 = vrot.slane %v345, %v349
        %v351 = vlaneseq
        %v352 = vshrl.u32 %v351, 7
        %v353 = vsub.s32 4, %v352
        %v354 = vrot.slane %v345, %v353
        %355 = vrot.lane.b32.xlu0 %v350, 124
        %v356 = vpop.permute.xlu0 %355
        %357 = vrot.lane.b32.xlu0 %v354, 124
        %v358 = vpop.permute.xlu0 %357
        %vm359 = vcmask 1014784
        %v360 = vsel %vm359, %v356, %v358
        %362 = vst [vmem:[#allocation2 + $0xc] sm:$0x1] %v360
        %v363 = vld [vmem:[%s182 + $0x1] sm:$0x11]
        %v365 = vlaneseq
        %v366 = vshrl.u32 %v365, 7
        %v367 = vsub.s32 0, %v366
        %v368 = vrot.slane %v363, %v367
        %v369 = vlaneseq
        %v370 = vshrl.u32 %v369, 7
        %v371 = vsub.s32 4, %v370
        %v372 = vrot.slane %v363, %v371
        %373 = vrot.lane.b32.xlu0 %v368, 124
        %v374 = vpop.permute.xlu0 %373
        %375 = vrot.lane.b32.xlu0 %v372, 124
        %v376 = vpop.permute.xlu0 %375
        %v377 = vsel %vm359, %v374, %v376
        %379 = vst [vmem:[#allocation2 + $0xd] sm:$0x1] %v377
        %v380 = vld [vmem:[%s182 + $0x2] sm:$0x11]
        %v382 = vlaneseq
        %v383 = vshrl.u32 %v382, 7
        %v384 = vsub.s32 0, %v383
        %v385 = vrot.slane %v380, %v384
        %v386 = vlaneseq
        %v387 = vshrl.u32 %v386, 7
        %v388 = vsub.s32 4, %v387
        %v389 = vrot.slane %v380, %v388
        %390 = vrot.lane.b32.xlu0 %v385, 124
        %v391 = vpop.permute.xlu0 %390
        %392 = vrot.lane.b32.xlu0 %v389, 124
        %v393 = vpop.permute.xlu0 %392
        %v394 = vsel %vm359, %v391, %v393
        %396 = vst [vmem:[#allocation2 + $0xe] sm:$0x1] %v394
        %v397 = vld [vmem:[%s182] sm:$0x11]
        %v399 = vlaneseq
        %v400 = vshrl.u32 %v399, 7
        %v401 = vsub.s32 0, %v400
        %v402 = vrot.slane %v397, %v401
        %v403 = vlaneseq
        %v404 = vshrl.u32 %v403, 7
        %v405 = vsub.s32 4, %v404
        %v406 = vrot.slane %v397, %v405
        %407 = vrot.lane.b32.xlu0 %v402, 123
        %v408 = vpop.permute.xlu0 %407
        %409 = vrot.lane.b32.xlu0 %v406, 123
        %v410 = vpop.permute.xlu0 %409
        %vm411 = vcmask 1006592
        %v412 = vsel %vm411, %v408, %v410
        %414 = vst [vmem:[#allocation2 + $0xf] sm:$0x1] %v412
        %v415 = vld [vmem:[%s182 + $0x1] sm:$0x11]
        %v417 = vlaneseq
        %v418 = vshrl.u32 %v417, 7
        %v419 = vsub.s32 0, %v418
        %v420 = vrot.slane %v415, %v419
        %v421 = vlaneseq
        %v422 = vshrl.u32 %v421, 7
        %v423 = vsub.s32 4, %v422
        %v424 = vrot.slane %v415, %v423
        %425 = vrot.lane.b32.xlu0 %v420, 123
        %v426 = vpop.permute.xlu0 %425
        %427 = vrot.lane.b32.xlu0 %v424, 123
        %v428 = vpop.permute.xlu0 %427
        %v429 = vsel %vm411, %v426, %v428
        %431 = vst [vmem:[#allocation2 + $0x10] sm:$0x1] %v429
        %v432 = vld [vmem:[%s182 + $0x2] sm:$0x11]
        %v434 = vlaneseq
        %v435 = vshrl.u32 %v434, 7
        %v436 = vsub.s32 0, %v435
        %v437 = vrot.slane %v432, %v436
        %v438 = vlaneseq
        %v439 = vshrl.u32 %v438, 7
        %v440 = vsub.s32 4, %v439
        %v441 = vrot.slane %v432, %v440
        %442 = vrot.lane.b32.xlu0 %v437, 123
        %v443 = vpop.permute.xlu0 %442
        %444 = vrot.lane.b32.xlu0 %v441, 123
        %v445 = vpop.permute.xlu0 %444
        %v446 = vsel %vm411, %v443, %v445
        %448 = vst [vmem:[#allocation2 + $0x11] sm:$0x1] %v446
        %v449 = vld [vmem:[%s182] sm:$0x11]
        %v451 = vlaneseq
        %v452 = vshrl.u32 %v451, 7
        %v453 = vsub.s32 0, %v452
        %v454 = vrot.slane %v449, %v453
        %v455 = vlaneseq
        %v456 = vshrl.u32 %v455, 7
        %v457 = vsub.s32 4, %v456
        %v458 = vrot.slane %v449, %v457
        %459 = vrot.lane.b32.xlu0 %v454, 122
        %v460 = vpop.permute.xlu0 %459
        %461 = vrot.lane.b32.xlu0 %v458, 122
        %v462 = vpop.permute.xlu0 %461
        %vm463 = vcmask 998400
        %v464 = vsel %vm463, %v460, %v462
        %466 = vst [vmem:[#allocation2 + $0x12] sm:$0x1] %v464
        %v467 = vld [vmem:[%s182 + $0x1] sm:$0x11]
        %v469 = vlaneseq
        %v470 = vshrl.u32 %v469, 7
        %v471 = vsub.s32 0, %v470
        %v472 = vrot.slane %v467, %v471
        %v473 = vlaneseq
        %v474 = vshrl.u32 %v473, 7
        %v475 = vsub.s32 4, %v474
        %v476 = vrot.slane %v467, %v475
        %477 = vrot.lane.b32.xlu0 %v472, 122
        %v478 = vpop.permute.xlu0 %477
        %479 = vrot.lane.b32.xlu0 %v476, 122
        %v480 = vpop.permute.xlu0 %479
        %v481 = vsel %vm463, %v478, %v480
        %483 = vst [vmem:[#allocation2 + $0x13] sm:$0x1] %v481
        %v484 = vld [vmem:[%s182 + $0x2] sm:$0x11]
        %v486 = vlaneseq
        %v487 = vshrl.u32 %v486, 7
        %v488 = vsub.s32 0, %v487
        %v489 = vrot.slane %v484, %v488
        %v490 = vlaneseq
        %v491 = vshrl.u32 %v490, 7
        %v492 = vsub.s32 4, %v491
        %v493 = vrot.slane %v484, %v492
        %494 = vrot.lane.b32.xlu0 %v489, 122
        %v495 = vpop.permute.xlu0 %494
        %496 = vrot.lane.b32.xlu0 %v493, 122
        %v497 = vpop.permute.xlu0 %496
        %v498 = vsel %vm463, %v495, %v497
        %500 = vst [vmem:[#allocation2 + $0x14] sm:$0x1] %v498
        %v501 = vld [vmem:[%s182] sm:$0x11]
        %v503 = vlaneseq
        %v504 = vshrl.u32 %v503, 7
        %v505 = vsub.s32 0, %v504
        %v506 = vrot.slane %v501, %v505
        %v507 = vlaneseq
        %v508 = vshrl.u32 %v507, 7
        %v509 = vsub.s32 4, %v508
        %v510 = vrot.slane %v501, %v509
        %511 = vrot.lane.b32.xlu0 %v506, 121
        %v512 = vpop.permute.xlu0 %511
        %513 = vrot.lane.b32.xlu0 %v510, 121
        %v514 = vpop.permute.xlu0 %513
        %vm515 = vcmask 990208
        %v516 = vsel %vm515, %v512, %v514
        %518 = vst [vmem:[#allocation2 + $0x15] sm:$0x1] %v516
        %v519 = vld [vmem:[%s182 + $0x1] sm:$0x11]
        %v521 = vlaneseq
        %v522 = vshrl.u32 %v521, 7
        %v523 = vsub.s32 0, %v522
        %v524 = vrot.slane %v519, %v523
        %v525 = vlaneseq
        %v526 = vshrl.u32 %v525, 7
        %v527 = vsub.s32 4, %v526
        %v528 = vrot.slane %v519, %v527
        %529 = vrot.lane.b32.xlu0 %v524, 121
        %v530 = vpop.permute.xlu0 %529
        %531 = vrot.lane.b32.xlu0 %v528, 121
        %v532 = vpop.permute.xlu0 %531
        %v533 = vsel %vm515, %v530, %v532
        %535 = vst [vmem:[#allocation2 + $0x16] sm:$0x1] %v533
        %v536 = vld [vmem:[%s182 + $0x2] sm:$0x11]
        %v538 = vlaneseq
        %v539 = vshrl.u32 %v538, 7
        %v540 = vsub.s32 0, %v539
        %v541 = vrot.slane %v536, %v540
        %v542 = vlaneseq
        %v543 = vshrl.u32 %v542, 7
        %v544 = vsub.s32 4, %v543
        %v545 = vrot.slane %v536, %v544
        %546 = vrot.lane.b32.xlu0 %v541, 121
        %v547 = vpop.permute.xlu0 %546
        %548 = vrot.lane.b32.xlu0 %v545, 121
        %v549 = vpop.permute.xlu0 %548
        %v550 = vsel %vm515, %v547, %v549
        %552 = vst [vmem:[#allocation2 + $0x17] sm:$0x1] %v550
        %v553 = vld [vmem:[%s182] sm:$0x11]
        %v555 = vlaneseq
        %v556 = vshrl.u32 %v555, 7
        %v557 = vsub.s32 0, %v556
        %v558 = vrot.slane %v553, %v557
        %v559 = vlaneseq
        %v560 = vshrl.u32 %v559, 7
        %v561 = vsub.s32 4, %v560
        %v562 = vrot.slane %v553, %v561
        %563 = vrot.lane.b32.xlu0 %v558, 120
        %v564 = vpop.permute.xlu0 %563
        %565 = vrot.lane.b32.xlu0 %v562, 120
        %v566 = vpop.permute.xlu0 %565
        %vm567 = vcmask 982016
        %v568 = vsel %vm567, %v564, %v566
        %570 = vst [vmem:[#allocation2 + $0x18] sm:$0x1] %v568
        %v571 = vld [vmem:[%s182 + $0x1] sm:$0x11]
        %v573 = vlaneseq
        %v574 = vshrl.u32 %v573, 7
        %v575 = vsub.s32 0, %v574
        %v576 = vrot.slane %v571, %v575
        %v577 = vlaneseq
        %v578 = vshrl.u32 %v577, 7
        %v579 = vsub.s32 4, %v578
        %v580 = vrot.slane %v571, %v579
        %581 = vrot.lane.b32.xlu0 %v576, 120
        %v582 = vpop.permute.xlu0 %581
        %583 = vrot.lane.b32.xlu0 %v580, 120
        %v584 = vpop.permute.xlu0 %583
        %v585 = vsel %vm567, %v582, %v584
        %587 = vst [vmem:[#allocation2 + $0x19] sm:$0x1] %v585
        %v588 = vld [vmem:[%s182 + $0x2] sm:$0x11]
        %v590 = vlaneseq
        %v591 = vshrl.u32 %v590, 7
        %v592 = vsub.s32 0, %v591
        %v593 = vrot.slane %v588, %v592
        %v594 = vlaneseq
        %v595 = vshrl.u32 %v594, 7
        %v596 = vsub.s32 4, %v595
        %v597 = vrot.slane %v588, %v596
        %598 = vrot.lane.b32.xlu0 %v593, 120
        %v599 = vpop.permute.xlu0 %598
        %600 = vrot.lane.b32.xlu0 %v597, 120
        %v601 = vpop.permute.xlu0 %600
        %v602 = vsel %vm567, %v599, %v601
        %604 = vst [vmem:[#allocation2 + $0x1a] sm:$0x1] %v602
        %v605 = vld [vmem:[%s182] sm:$0x11]
        %v607 = vlaneseq
        %v608 = vshrl.u32 %v607, 7
        %v609 = vsub.s32 0, %v608
        %v610 = vrot.slane %v605, %v609
        %v611 = vlaneseq
        %v612 = vshrl.u32 %v611, 7
        %v613 = vsub.s32 4, %v612
        %v614 = vrot.slane %v605, %v613
        %615 = vrot.lane.b32.xlu0 %v610, 119
        %v616 = vpop.permute.xlu0 %615
        %617 = vrot.lane.b32.xlu0 %v614, 119
        %v618 = vpop.permute.xlu0 %617
        %vm619 = vcmask 973824
        %v620 = vsel %vm619, %v616, %v618
        %622 = vst [vmem:[#allocation2 + $0x1b] sm:$0x1] %v620
        %v623 = vld [vmem:[%s182 + $0x1] sm:$0x11]
        %v625 = vlaneseq
        %v626 = vshrl.u32 %v625, 7
        %v627 = vsub.s32 0, %v626
        %v628 = vrot.slane %v623, %v627
        %v629 = vlaneseq
        %v630 = vshrl.u32 %v629, 7
        %v631 = vsub.s32 4, %v630
        %v632 = vrot.slane %v623, %v631
        %633 = vrot.lane.b32.xlu0 %v628, 119
        %v634 = vpop.permute.xlu0 %633
        %635 = vrot.lane.b32.xlu0 %v632, 119
        %v636 = vpop.permute.xlu0 %635
        %v637 = vsel %vm619, %v634, %v636
        %639 = vst [vmem:[#allocation2 + $0x1c] sm:$0x1] %v637
        %v640 = vld [vmem:[%s182 + $0x2] sm:$0x11]
        %v642 = vlaneseq
        %v643 = vshrl.u32 %v642, 7
        %v644 = vsub.s32 0, %v643
        %v645 = vrot.slane %v640, %v644
        %v646 = vlaneseq
        %v647 = vshrl.u32 %v646, 7
        %v648 = vsub.s32 4, %v647
        %v649 = vrot.slane %v640, %v648
        %650 = vrot.lane.b32.xlu0 %v645, 119
        %v651 = vpop.permute.xlu0 %650
        %652 = vrot.lane.b32.xlu0 %v649, 119
        %v653 = vpop.permute.xlu0 %652
        %v654 = vsel %vm619, %v651, %v653
        %656 = vst [vmem:[#allocation2 + $0x1d] sm:$0x1] %v654
        %v657 = vld [vmem:[%s182] sm:$0x11]
        %v659 = vlaneseq
        %v660 = vshrl.u32 %v659, 7
        %v661 = vsub.s32 0, %v660
        %v662 = vrot.slane %v657, %v661
        %v663 = vlaneseq
        %v664 = vshrl.u32 %v663, 7
        %v665 = vsub.s32 4, %v664
        %v666 = vrot.slane %v657, %v665
        %667 = vrot.lane.b32.xlu0 %v662, 118
        %v668 = vpop.permute.xlu0 %667
        %669 = vrot.lane.b32.xlu0 %v666, 118
        %v670 = vpop.permute.xlu0 %669
        %vm671 = vcmask 965632
        %v672 = vsel %vm671, %v668, %v670
        %674 = vst [vmem:[#allocation2 + $0x1e] sm:$0x1] %v672
        %v675 = vld [vmem:[%s182 + $0x1] sm:$0x11]
        %v677 = vlaneseq
        %v678 = vshrl.u32 %v677, 7
        %v679 = vsub.s32 0, %v678
        %v680 = vrot.slane %v675, %v679
        %v681 = vlaneseq
        %v682 = vshrl.u32 %v681, 7
        %v683 = vsub.s32 4, %v682
        %v684 = vrot.slane %v675, %v683
        %685 = vrot.lane.b32.xlu0 %v680, 118
        %v686 = vpop.permute.xlu0 %685
        %687 = vrot.lane.b32.xlu0 %v684, 118
        %v688 = vpop.permute.xlu0 %687
        %v689 = vsel %vm671, %v686, %v688
        %691 = vst [vmem:[#allocation2 + $0x1f] sm:$0x1] %v689
        %v692 = vld [vmem:[%s182 + $0x2] sm:$0x11]
        %v694 = vlaneseq
        %v695 = vshrl.u32 %v694, 7
        %v696 = vsub.s32 0, %v695
        %v697 = vrot.slane %v692, %v696
        %v698 = vlaneseq
        %v699 = vshrl.u32 %v698, 7
        %v700 = vsub.s32 4, %v699
        %v701 = vrot.slane %v692, %v700
        %702 = vrot.lane.b32.xlu0 %v697, 118
        %v703 = vpop.permute.xlu0 %702
        %704 = vrot.lane.b32.xlu0 %v701, 118
        %v705 = vpop.permute.xlu0 %704
        %v706 = vsel %vm671, %v703, %v705
        %708 = vst [vmem:[#allocation2 + $0x20] sm:$0x1] %v706
        %v709 = vld [vmem:[%s1] sm:$0xff]
        %v710 = vld [vmem:[%s1 + $0x8] sm:$0xff]
        %v711 = vld [vmem:[%s1 + $0x10] sm:$0xff]
        %v712 = vld [vmem:[%s1 + $0x18] sm:$0xff]
        %v713 = vld [vmem:[%s1 + $0x20] sm:$0xff]
        %v714 = vld [vmem:[%s1 + $0x28] sm:$0xff]
        %v715 = vld [vmem:[%s1 + $0x30] sm:$0xff]
        %v716 = vld [vmem:[%s1 + $0x38] sm:$0xff]
        %v717 = vld [vmem:[%s1 + $0x40] sm:$0xff]
        %v718 = vld [vmem:[#allocation2] sm:$0xff]
        %v719 = vld [vmem:[#allocation2 + $0x8] sm:$0xff]
        %v720 = vld [vmem:[#allocation2 + $0x10] sm:$0xff]
        %v721 = vld [vmem:[#allocation2 + $0x18] sm:$0xff]
        %v722 = vld [vmem:[#allocation2 + $0x20] sm:$0x1]
        %vm723 = vcmask 269312
        %v725 = vsel %vm723, %v709, 0
        %v728 = vsel %vm723, %v710, 0
        %v731 = vsel %vm723, %v711, 0
        %v734 = vsel %vm723, %v712, 0
        %v737 = vsel %vm723, %v713, 0
        %v740 = vsel %vm723, %v714, 0
        %v743 = vsel %vm723, %v715, 0
        %v746 = vsel %vm723, %v716, 0
        %v749 = vsel %vm723, %v717, 0
        %vm751 = vcmask 1040384
        %v753 = vsel %vm751, %v722, 0
        %755 = vmatprep.subr.mxu0 0.0
        %756 = vmatpush1.msra.mxu0 %v718
        %757 = vmatprep.subr.mxu0 0.0
        %758 = vmatpush1.msra.mxu0 %v719
        %759 = vmatprep.subr.mxu0 0.0
        %760 = vmatpush1.msra.mxu0 %v720
        %761 = vmatprep.subr.mxu0 0.0
        %762 = vmatpush1.msra.mxu0 %v721
        %763 = vmatprep.subr.mxu0 0.0
        %764 = vmatpush1.msra.mxu0 %v753
        %765 = vmatprep.subr.mxu0 0.0
        %766 = vmatpush1.msra.mxu0 0.0
        %767 = vmatprep.subr.mxu0 0.0
        %768 = vmatpush1.msra.mxu0 0.0
        %769 = vmatprep.subr.mxu0 0.0
        %770 = vmatpush1.msra.mxu0 0.0
        %771 = vmatprep.subr.mxu0 0.0
        %772 = vmatpush1.msra.mxu0 0.0
        %773 = vmatprep.subr.mxu0 0.0
        %774 = vmatpush1.msra.mxu0 0.0
        %775 = vmatprep.subr.mxu0 0.0
        %776 = vmatpush1.msra.mxu0 0.0
        %777 = vmatprep.subr.mxu0 0.0
        %778 = vmatpush1.msra.mxu0 0.0
        %779 = vmatprep.subr.mxu0 0.0
        %780 = vmatpush1.msra.mxu0 0.0
        %781 = vmatprep.subr.mxu0 0.0
        %782 = vmatpush1.msra.mxu0 0.0
        %783 = vmatprep.subr.mxu0 0.0
        %784 = vmatpush1.msra.mxu0 0.0
        %785 = vmatprep.subr.mxu0 0.0
        %786 = vmatpush1.msra.mxu0 0.0
        %787 = vmatprep.subr.mxu0 0.0
        %788 = vmatpush1.msra.mxu0 0.0
        %789 = vmatprep.subr.mxu0 0.0
        %790 = vmatpush1.msra.mxu0 0.0
        %791 = vmatprep.subr.mxu0 0.0
        %792 = vmatpush1.msra.mxu0 0.0
        %793 = vmatprep.subr.mxu0 0.0
        %794 = vmatpush1.msra.mxu0 0.0
        %795 = vmatprep.subr.mxu0 0.0
        %796 = vmatpush1.msra.mxu0 0.0
        %797 = vmatprep.subr.mxu0 0.0
        %798 = vmatpush1.msra.mxu0 0.0
        %799 = vmatprep.subr.mxu0 0.0
        %800 = vmatpush1.msra.mxu0 0.0
        %801 = vmatprep.subr.mxu0 0.0
        %802 = vmatpush1.msra.mxu0 0.0
        %803 = vmatprep.subr.mxu0 0.0
        %804 = vmatpush1.msra.mxu0 0.0
        %805 = vmatprep.subr.mxu0 0.0
        %806 = vmatpush1.msra.mxu0 0.0
        %807 = vmatprep.subr.mxu0 0.0
        %808 = vmatpush1.msra.mxu0 0.0
        %809 = vmatprep.subr.mxu0 0.0
        %810 = vmatpush1.msra.mxu0 0.0
        %811 = vmatprep.subr.mxu0 0.0
        %812 = vmatpush1.msra.mxu0 0.0
        %813 = vmatprep.subr.mxu0 0.0
        %814 = vmatpush1.msra.mxu0 0.0
        %815 = vmatprep.subr.mxu0 0.0
        %816 = vmatpush1.msra.mxu0 0.0
        %817 = vmatprep.subr.mxu0 0.0
        %818 = vmatpush1.msra.mxu0 0.0
        %819 = vmatprep.mubr.f32.mxu0 0.0
        %820 = vmatmul.mubr.f32.gmra.mrb[0].mxu0 %v725
        %v821 = vpop.f32.mrb[0].mxu0
        %v822 = vadd.f32 0.0, %v821
        %v823 = vpop.f32.mrb[0].mxu0
        %824 = vmatprep.mubr.f32.mxu0 0.0
        %825 = vmatmul.mubr.f32.gmra.mrb[0].mxu0 %v728
        %v826 = vpop.f32.mrb[0].mxu0
        %v827 = vadd.f32 0.0, %v826
        %v828 = vpop.f32.mrb[0].mxu0
        %829 = vmatprep.mubr.f32.mxu0 0.0
        %830 = vmatmul.mubr.f32.gmra.mrb[0].mxu0 %v731
        %v831 = vpop.f32.mrb[0].mxu0
        %v832 = vadd.f32 0.0, %v831
        %v833 = vpop.f32.mrb[0].mxu0
        %834 = vmatprep.mubr.f32.mxu0 0.0
        %835 = vmatmul.mubr.f32.gmra.mrb[0].mxu0 %v734
        %v836 = vpop.f32.mrb[0].mxu0
        %v837 = vadd.f32 0.0, %v836
        %v838 = vpop.f32.mrb[0].mxu0
        %839 = vmatprep.mubr.f32.mxu0 0.0
        %840 = vmatmul.mubr.f32.gmra.mrb[0].mxu0 %v737
        %v841 = vpop.f32.mrb[0].mxu0
        %v842 = vadd.f32 0.0, %v841
        %v843 = vpop.f32.mrb[0].mxu0
        %844 = vmatprep.mubr.f32.mxu0 0.0
        %845 = vmatmul.mubr.f32.gmra.mrb[0].mxu0 %v740
        %v846 = vpop.f32.mrb[0].mxu0
        %v847 = vadd.f32 0.0, %v846
        %v848 = vpop.f32.mrb[0].mxu0
        %849 = vmatprep.mubr.f32.mxu0 0.0
        %850 = vmatmul.mubr.f32.gmra.mrb[0].mxu0 %v743
        %v851 = vpop.f32.mrb[0].mxu0
        %v852 = vadd.f32 0.0, %v851
        %v853 = vpop.f32.mrb[0].mxu0
        %854 = vmatprep.mubr.f32.mxu0 0.0
        %855 = vmatmul.mubr.f32.gmra.mrb[0].mxu0 %v746
        %v856 = vpop.f32.mrb[0].mxu0
        %v857 = vadd.f32 0.0, %v856
        %v858 = vpop.f32.mrb[0].mxu0
        %859 = vmatprep.mubr.f32.mxu0 0.0
        %860 = vmatmul.mubr.f32.gmra.mrb[0].mxu0 %v749
        %v861 = vpop.f32.mrb[0].mxu0
        %v862 = vadd.f32 0.0, %v861
        %v863 = vpop.f32.mrb[0].mxu0
        %864 = vdwg.mxu0
        %v865 = vand.u32 2147483647, %v822
        %v866 = vand.u32 2147483647, %v827
        %v867 = vand.u32 2147483647, %v832
        %v868 = vand.u32 2147483647, %v837
        %v869 = vand.u32 2147483647, %v842
        %v870 = vand.u32 2147483647, %v847
        %v871 = vand.u32 2147483647, %v852
        %v872 = vand.u32 2147483647, %v857
        %v873 = vand.u32 2147483647, %v862
        %v874 = vmax.f32 %v865, %v866
        %v875 = vmax.f32 %v874, %v867
        %v876 = vmax.f32 %v875, %v868
        %v877 = vmax.f32 %v876, %v869
        %v878 = vmax.f32 %v877, %v870
        %v879 = vmax.f32 %v878, %v871
        %v880 = vmax.f32 %v879, %v872
        %v881 = vmax.f32 %v880, %v873
        %s882 = sld [smem:[#allocation3]]
        %v883 = vstv %s882
        %v884 = vmul.f32 %v881, %v883
        %s885 = sld [smem:[#allocation3 + $0x1]]
        %v886 = vstv %s885
        %v887 = vadd.f32 %v884, %v886
        %v888 = vmin.f32 %v887, 0.0
        %v889 = vmul.f32 %v888, 1.442695
        %v890 = vpow.pop %v889
        %v891 = vsub.f32 %v890, 1.0
        %v892 = vmul.f32 %v891, 1.6732632
        %vm893 = vcmp.gt.f32.partialorder %v887, 0.0
        %v894 = vsel %vm893, %v887, %v892
        %v895 = vmul.f32 %v894, 1.050701
        %896 = vst [vmem:[%s177] sm:$0xff] %v895
        %s897 = sand.u32 %s94, 1
        %s898 = scalar_lea.sflag [#allocation4], %s897
        %s899 = sand.u32 %s94, 1
        %s900 = smul.addr %s899, 8
        %s901 = scalar_lea.vmem [#allocation6], %s900
        // Predicated region
        $region37: #{tpu_custom_call.1} parent=31 // pred_check
          %p902 = pneg %p104
        $region38: #{tpu_custom_call.1} parent=31 // pred_check_branch
          %904 = sbr.rel (%p902) target = $region40
        $region39: #{tpu_custom_call.1} parent=31 // pred_region
          %s906 = ssub.s32 128, 128
          %907 = vsyncadd %s898, %s906
          %s908 = smul.addr %s18, 128
          %s909 = scalar_lea.hbm %s3, %s908
          %s911 = sshll.u32 %s901, 4
          %s912 = int_to_ptr.vmem [resolvable:$true] %s911
          %914 = dma.vmem_to_hbm [thread:$0]  %s912, 128, %s909, %s898
        $region40: #{tpu_custom_call.1} parent=31 // pred_fallthru
          _
      $region32: #{tpu_custom_call.1} parent=5 // pred_fallthru
        _
      %p915 = scmp.le.s32.totalorder 2, %s13
      // Predicated region
      $region41: #{tpu_custom_call.1} parent=5 // pred_check
        %p916 = pneg %p915
      $region42: #{tpu_custom_call.1} parent=5 // pred_check_branch
        %918 = sbr.rel (%p916) target = $region44
      $region43: #{tpu_custom_call.1} parent=5 // pred_region
        %s919 = ssub.s32 %s13, 2
        // Predicated region
        $region45: #{tpu_custom_call.1} parent=43 // pred_check
          %p920 = pneg %p110
        $region46: #{tpu_custom_call.1} parent=43 // pred_check_branch
          %922 = sbr.rel (%p920) target = $region48
        $region47: #{tpu_custom_call.1} parent=43 // pred_region
          %s923 = sand.u32 %s95, 1
          %s924 = scalar_lea.sflag [#allocation4], %s923
          %s925 = sand.u32 %s95, 1
          %s926 = smul.addr %s925, 8
          %s927 = scalar_lea.vmem [#allocation6], %s926
          %928 = dma.done %s924, 128
        $region48: #{tpu_custom_call.1} parent=43 // pred_fallthru
          _
      $region44: #{tpu_custom_call.1} parent=5 // pred_fallthru
        _
    $region6: #{tpu_custom_call.1} parent=1 // loop_footer
      %s17 = sadd.s32 1, %s13
    $region7: #{tpu_custom_call.1} parent=1 // loop_footer_branch
      %12 = sbr.rel target = $region3
    $region8: #{tpu_custom_call.1} parent=1 // loop_exit
      _
    %929 = vsyncpa [#allocation4], 1
    %s930 = scalar_lea.sflag [#allocation4], 1
    %931 = vsyncpa %s930, 1
    %932 = vsyncpa [#allocation5], 1
    %s933 = scalar_lea.sflag [#allocation5], 1
    %934 = vsyncpa %s933, 1

</llo_original>
